<compile_context>
chip_gen: v7x
topology: tpu7x:2x2x1
jax: 0.10.0
libtpu: 0.0.40
codegen_flags: <defaults>
</compile_context>

<pallas_src>
import math

import jax
import jax.numpy as jnp
from jax.experimental import pallas as pl
from jax.experimental.pallas import tpu as pltpu

_MIB = 1024 * 1024


def _vmem_budget_bytes():
    """Scoped-VMEM budget, generation aware (v5e/v6e: 128 MiB phys, v7x: 64 MiB)."""
    try:
        cap = int(pltpu.get_tpu_info().vmem_capacity_bytes)
    except Exception:
        cap = 64 * _MIB  # conservative (v7x-sized) fallback
    # Leave ~16 MiB headroom for Mosaic-internal scratch, cap the scoped limit at 64 MiB.
    return max(16 * _MIB, min(64 * _MIB, cap - 16 * _MIB))


# --------------------------------------------------------------------------
# Kernels (pure HBM-roofline elementwise add; f32 compute, x.dtype output)
# --------------------------------------------------------------------------
def _pe_add_3d_kernel(x_ref, pe_ref, o_ref):
    # x_ref / o_ref: (tile_b, tile_l, tile_d); pe_ref: (tile_l, tile_d), broadcast over batch.
    x = x_ref[...].astype(jnp.float32)
    pe = pe_ref[...].astype(jnp.float32)
    o_ref[...] = (x + pe[None, :, :]).astype(o_ref.dtype)
    # TODO(synk): training-mode dropout could be fused here
    #             (pltpu.prng_seed + pltpu.prng_random_bits mask + 1/(1-p) scale).


def _pe_add_flat_kernel(x_ref, pe_ref, o_ref):
    # x_ref / o_ref: (tile_b, tile_n); pe_ref: (1, tile_n), broadcast over rows.
    x = x_ref[...].astype(jnp.float32)
    pe = pe_ref[...].astype(jnp.float32)
    o_ref[...] = (x + pe).astype(o_ref.dtype)


# --------------------------------------------------------------------------
# Wrapper: out = x + pe[None]   (x: (B, L, D), pe: (L, D) shared across batch)
# --------------------------------------------------------------------------
def positional_encoding_add(x, pe):
    B, L, D = x.shape
    assert pe.shape == (L, D), (pe.shape, (L, D))

    itemsize = jnp.dtype(x.dtype).itemsize
    budget = _vmem_budget_bytes()
    # Worst case ~6 live tiles (2x in + 2x out + 2x pe); keep each tile <= 8 MiB.
    target = min(8 * _MIB, budget // 7)
    total_x_bytes = B * L * D * itemsize
    pe_f32 = pe.astype(jnp.float32)  # PyTorch keeps the pe buffer in f32

    if D % 128 == 0:
        # ------------------------- 3-D (lane-dense D) path -------------------------
        slab = L * D * itemsize  # one batch element
        if slab <= target:
            tile_b = max(1, min(B, target // slab))
            # Guarantee >= 2 grid steps (megacore sharding) when worth the overhead.
            if B >= 2 and total_x_bytes >= _MIB:
                tile_b = min(tile_b, pl.cdiv(B, 2))
            tile_l, tile_d = L, D
        elif 8 * D * itemsize <= target:
            # One batch row at a time, tile the sequence axis (multiples of 8 sublanes).
            tile_b = 1
            tile_l = min(L, max(8, (target // (D * itemsize)) // 8 * 8))
            tile_d = D
        else:
            # Degenerate: even 8 sequence rows exceed the budget -> tile lanes too.
            tile_b = 1
            tile_l = min(L, 8)
            tile_d = min(D, max(128, (target // (8 * itemsize)) // 128 * 128))

        grid = (pl.cdiv(B, tile_b), pl.cdiv(L, tile_l), pl.cdiv(D, tile_d))
        x_spec = pl.BlockSpec((tile_b, tile_l, tile_d), lambda b, l, d: (b, l, d))
        # Block index constant along the batch axis -> pe stays resident in VMEM.
        pe_spec = pl.BlockSpec((tile_l, tile_d), lambda b, l, d: (l, d))

        return pl.pallas_call(
            _pe_add_3d_kernel,
            out_shape=jax.ShapeDtypeStruct((B, L, D), x.dtype),
            grid_spec=pltpu.PrefetchScalarGridSpec(
                num_scalar_prefetch=0,
                grid=grid,
                in_specs=[x_spec, pe_spec],
                out_specs=x_spec,
            ),
            compiler_params=pltpu.CompilerParams(
                dimension_semantics=("parallel", "parallel", "parallel"),
                vmem_limit_bytes=budget,
            ),
        )(x, pe_f32)

    # ------------------------- flattened (D < 128 / ragged D) path -------------------------
    N = L * D
    x2 = x.reshape(B, N)
    pe2 = pe_f32.reshape(1, N)

    row_bytes = N * itemsize
    pe_pad_bytes = 8 * N * 4  # a (1, N) f32 block occupies 8 sublanes in VMEM
    if row_bytes <= target and pe_pad_bytes <= target:
        tile_b = max(1, min(B, target // row_bytes))
        if B >= 2 and total_x_bytes >= _MIB:
            tile_b = min(tile_b, pl.cdiv(B, 2))
        if tile_b < B:
            # 2-D block: a non-full sublane dim must be a multiple of 8.
            tile_b = min(B, max(8, (tile_b // 8) * 8))
        tile_n = N
    else:
        # A single flattened row (or the padded pe block) exceeds the budget:
        # tile the lane axis in multiples of 128 (lane-dense stores preserved).
        tile_b = min(B, 8)
        lane_budget_elems = max(128, (target // (8 * itemsize)) // 128 * 128)
        tile_n = min(N, lane_budget_elems)

    grid = (pl.cdiv(B, tile_b), pl.cdiv(N, tile_n))
    x_spec = pl.BlockSpec((tile_b, tile_n), lambda b, n: (b, n))
    pe_spec = pl.BlockSpec((1, tile_n), lambda b, n: (0, n))

    out2 = pl.pallas_call(
        _pe_add_flat_kernel,
        out_shape=jax.ShapeDtypeStruct((B, N), x.dtype),
        grid_spec=pltpu.PrefetchScalarGridSpec(
            num_scalar_prefetch=0,
            grid=grid,
            in_specs=[x_spec, pe_spec],
            out_specs=x_spec,
        ),
        compiler_params=pltpu.CompilerParams(
            dimension_semantics=("parallel", "parallel"),
            vmem_limit_bytes=budget,
        ),
    )(x2, pe2)
    return out2.reshape(B, L, D)


# --------------------------------------------------------------------------
# Module-equivalent wrapper
# --------------------------------------------------------------------------
class PositionalEncoding:
    def __init__(self, d_model, dropout, max_len, batch_num):
        # Same buffer construction as the PyTorch __init__, but stored once as
        # (max_len, d_model) instead of repeated batch_num times (the repeated
        # copies are identical, so forward semantics are unchanged).
        assert d_model % 2 == 0, "d_model must be even (same constraint as the PyTorch original)"
        position = jnp.arange(0, max_len, dtype=jnp.float32)[:, None]            # (max_len, 1)
        div_term = jnp.exp(
            jnp.arange(0, d_model, 2, dtype=jnp.float32)
            * (-math.log(10000.0) / d_model)
        )                                                                          # (d_model/2,)
        pe = jnp.zeros((max_len, d_model), dtype=jnp.float32)
        pe = pe.at[:, 0::2].set(jnp.sin(position * div_term))
        pe = pe.at[:, 1::2].set(jnp.cos(position * div_term))
        self.pe = pe                      # (max_len, d_model), f32, shared across batch
        self.batch_num = batch_num
        self.dropout_p = dropout          # identity in eval mode
        # TODO(synk): training-mode dropout (fused in-kernel PRNG mask + 1/(1-p) scale).

    def __call__(self, x):
        B, L, D = x.shape
        pe_slice = self.pe[:L, :D]        # like pe[:batch, :x.size(1)], minus redundant batch copies
        return positional_encoding_add(x, pe_slice)   # eval-mode dropout == identity


# --------------------------------------------------------------------------
# Demo / correctness check (exercises both the flattened and the 3-D path)
# --------------------------------------------------------------------------
if __name__ == "__main__":
    key = jax.random.PRNGKey(0)

    # Case 1: D < 128 -> flattened lane-dense path (batch=2, seq=8, hidden=32)
    d_model, max_len, batch_num, dropout = 32, 16, 4, 0.1
    B, L = 2, 8
    k1, k2 = jax.random.split(key)
    x = jax.random.normal(k1, (B, L, d_model), dtype=jnp.float32)
    module = PositionalEncoding(d_model, dropout, max_len, batch_num)
    out = jax.block_until_ready(module(x))
    ref = x + module.pe[None, :L, :]
    assert out.shape == (B, L, d_model)
    assert jnp.allclose(out, ref, atol=1e-6), "mismatch vs reference (flattened path)"

    # Case 2: D % 128 == 0 -> 3-D lane-dense path (batch=4, seq=16, hidden=128)
    d_model2, max_len2, B2, L2 = 128, 32, 4, 16
    x2 = jax.random.normal(k2, (B2, L2, d_model2), dtype=jnp.float32)
    module2 = PositionalEncoding(d_model2, dropout, max_len2, batch_num)
    out2 = jax.block_until_ready(module2(x2))
    ref2 = x2 + module2.pe[None, :L2, :]
    assert out2.shape == (B2, L2, d_model2)
    assert jnp.allclose(out2, ref2, atol=1e-6), "mismatch vs reference (3-D path)"

    print("KERNEL_OK")
</pallas_src>

<mosaic_0001>
module attributes {stable_mosaic.version = 11 : i64} {
  func.func @_pe_add_flat_kernel(%arg0: i32, %arg1: i32, %arg2: memref<2x256xf32, #tpu.memory_space<vmem>>, %arg3: memref<1x256xf32, #tpu.memory_space<vmem>>, %arg4: memref<2x256xf32, #tpu.memory_space<vmem>>) attributes {dimension_semantics = [#tpu.dimension_semantics<parallel>, #tpu.dimension_semantics<parallel>], iteration_bounds = array<i64: 1, 1>, scalar_prefetch = 0 : i64, scratch_operands = 0 : i64, tpu.core_type = #tpu.core_type<tc>, window_params = [{transform_indices = @transform_0, window_bounds = array<i64: 2, 256>}, {transform_indices = @transform_1, window_bounds = array<i64: 1, 256>}, {transform_indices = @transform_2, window_bounds = array<i64: 2, 256>}]} {
    %c0 = arith.constant 0 : index
    %c0_0 = arith.constant 0 : index
    %0 = vector.load %arg2[%c0, %c0_0] : memref<2x256xf32, #tpu.memory_space<vmem>>, vector<2x256xf32>
    %c0_1 = arith.constant 0 : index
    %c0_2 = arith.constant 0 : index
    %1 = vector.load %arg3[%c0_1, %c0_2] : memref<1x256xf32, #tpu.memory_space<vmem>>, vector<1x256xf32>
    %2 = vector.broadcast %1 : vector<1x256xf32> to vector<2x256xf32>
    %3 = arith.addf %0, %2 : vector<2x256xf32>
    %c0_3 = arith.constant 0 : index
    %c0_4 = arith.constant 0 : index
    %4 = vector.load %arg4[%c0_3, %c0_4] : memref<2x256xf32, #tpu.memory_space<vmem>>, vector<2x256xf32>
    tpu.vector_store %arg4[%c0_3, %c0_4], %3 {strides = array<i32>} : memref<2x256xf32, #tpu.memory_space<vmem>>, vector<2x256xf32>,
    return
  }
  func.func @transform_0(%arg0: i32, %arg1: i32) -> (i32, i32) {
    %c0_i32 = arith.constant 0 : i32
    return %arg0, %arg1 : i32, i32
  }
  func.func @transform_1(%arg0: i32, %arg1: i32) -> (i32, i32) {
    %c0_i32 = arith.constant 0 : i32
    %c0_i32_0 = arith.constant 0 : i32
    return %c0_i32, %arg1 : i32, i32
  }
  func.func @transform_2(%arg0: i32, %arg1: i32) -> (i32, i32) {
    %c0_i32 = arith.constant 0 : i32
    return %arg0, %arg1 : i32, i32
  }
}

</mosaic_0001>

<llo_original>
// kernel: tpu_custom_call.1
$region0: #{tpu_custom_call.1}
  #allocation0 [shape = 'u32[]', space=smem, size = 0x4, offset = 0x4, fixed_abs, tag = 'smem constant byte address 0x4 - core index']
  #allocation1 [shape = 'u32[144,128]{1,0:T(1,128)}', space=vmem, size = 0x12000, scoped, tag = 'internal scratch']
  %s0 = inlined_call_operand.hbm [shape: f32[2,256], index: 0, kind: input, shape index: {}]
  %s1 = inlined_call_operand.vmem [shape: f32[1,256], index: 1, kind: input, shape index: {}]
  %s2 = inlined_call_operand.hbm [shape: f32[2,256], index: 2, kind: output, shape index: {}]
  %s3 = sld [smem:[#allocation0]]
  $region22: #{tpu_custom_call.1} parent=0
    _
  %s5 = ssub.s32 1, %s3
  %s6 = scalar_select 0, %s5, %s3
  $region1: #{tpu_custom_call.1} parent=0
    #allocation2 [shape = 'u8[2048]{0}', space=vmem, size = 0x800, scoped, tag = 'input window, operand 0, single buffered']
    #allocation3 [shape = 's32[1]{0}', space=sflag, size = 0x4, scoped, tag = 'scoped memory for tpu_custom_call.1']
    #allocation4 [shape = 's32[1]{0}', space=sflag, size = 0x4, scoped, tag = 'scoped memory for tpu_custom_call.1']
    #allocation5 [shape = 'u8[2048]{0}', space=vmem, size = 0x800, scoped, tag = 'output window, operand 0, single buffered']
    %7 = vsyncpa [#allocation3], 0
    %8 = vsyncpa [#allocation4], 0
    // Predicated region
    $region2: #{tpu_custom_call.1} parent=1 // pred_check
      _
    $region3: #{tpu_custom_call.1} parent=1 // pred_check_branch
      %10 = sbr.rel (0) target = $region5
    $region4: #{tpu_custom_call.1} parent=1 // pred_region
      %s12 = ssub.s32 64, 64
      %13 = vsyncadd [#allocation3], %s12
      %s15 = sshll.u32 [#allocation2], 4
      %s16 = int_to_ptr.vmem [resolvable:$true] %s15
      %18 = dma.hbm_to_vmem [thread:$0]  %s0, 64, %s16, [#allocation3]
    $region5: #{tpu_custom_call.1} parent=1 // pred_fallthru
      _
    // Predicated region
    $region6: #{tpu_custom_call.1} parent=1 // pred_check
      _
    $region7: #{tpu_custom_call.1} parent=1 // pred_check_branch
      %20 = sbr.rel (0) target = $region9
    $region8: #{tpu_custom_call.1} parent=1 // pred_region
      _
    $region9: #{tpu_custom_call.1} parent=1 // pred_fallthru
      _
    // Predicated region
    $region10: #{tpu_custom_call.1} parent=1 // pred_check
      _
    $region11: #{tpu_custom_call.1} parent=1 // pred_check_branch
      %22 = sbr.rel (0) target = $region13
    $region12: #{tpu_custom_call.1} parent=1 // pred_region
      %23 = dma.done [#allocation3], 64
    $region13: #{tpu_custom_call.1} parent=1 // pred_fallthru
      _
    %v24 = vld [vmem:[#allocation2] sm:$0xf]
    %v25 = vld [vmem:[%s1] sm:$0x3]
    %v27 = vlaneseq
    %v28 = vshrl.u32 %v27, 7
    %v29 = vsub.s32 0, %v28
    %v30 = vrot.slane %v25, %v29
    %v31 = vlaneseq
    %v32 = vshrl.u32 %v31, 7
    %v33 = vsub.s32 1, %v32
    %v34 = vrot.slane %v25, %v33
    %v35 = vcombine.low %v30, %v34
    %v37 = vunpack.c.l.s4 1983009808
    %v38 = vunpack.c.0.s8 %v37
    %v39 = vlaneseq
    %v40 = vshrl.u32 %v39, 7
    %v41 = vsub.s32 %v38, %v40
    %v42 = vrot.slane %v35, %v41
    %v44 = vadd.f32 %v24, %v42
    %45 = vst [vmem:[#allocation5] sm:$0xf] %v44
    // Predicated region
    $region14: #{tpu_custom_call.1} parent=1 // pred_check
      _
    $region15: #{tpu_custom_call.1} parent=1 // pred_check_branch
      %47 = sbr.rel (0) target = $region17
    $region16: #{tpu_custom_call.1} parent=1 // pred_region
      %s49 = ssub.s32 64, 64
      %50 = vsyncadd [#allocation4], %s49
      %s52 = sshll.u32 [#allocation5], 4
      %s53 = int_to_ptr.vmem [resolvable:$true] %s52
      %55 = dma.vmem_to_hbm [thread:$0]  %s53, 64, %s2, [#allocation4]
    $region17: #{tpu_custom_call.1} parent=1 // pred_fallthru
      _
    // Predicated region
    $region18: #{tpu_custom_call.1} parent=1 // pred_check
      _
    $region19: #{tpu_custom_call.1} parent=1 // pred_check_branch
      %57 = sbr.rel (0) target = $region21
    $region20: #{tpu_custom_call.1} parent=1 // pred_region
      %58 = dma.done [#allocation4], 64
    $region21: #{tpu_custom_call.1} parent=1 // pred_fallthru
      _
    %59 = vsyncpa [#allocation3], 1
    %60 = vsyncpa [#allocation4], 1

</llo_original>
